<compile_context>
chip_gen: v7x
topology: tpu7x:2x2x1
jax: 0.10.0
libtpu: 0.0.40
codegen_flags: <defaults>
</compile_context>

<pallas_src>
import jax
import jax.numpy as jnp
from jax.experimental import pallas as pl
from jax.experimental.pallas import tpu as pltpu


def mlp_kernel(x_ref, w_ref, b_ref, o_ref):
    # x_ref: (tile_b, 384) VMEM   w_ref: (1, 384) VMEM (lane-major, resident)
    # b_ref: (1, 1) SMEM scalar   o_ref: (1, tile_b) VMEM (lane-dense output)
    x = x_ref[...].astype(jnp.float32)
    w = w_ref[...].astype(jnp.float32)              # broadcasts over sublanes
    y = jnp.sum(x * w, axis=-1)                     # VPU mul + XLU lane reduce -> (tile_b,)
    y = jnp.maximum(y + b_ref[0, 0], 0.0)           # bias + ReLU in f32
    o_ref[...] = y[None, :].astype(o_ref.dtype)     # lane-dense (1, tile_b) store


def mlp_forward(x, w, b, *, block_b=4096):
    """ReLU(x @ w.T + b).

    x: (B, 384) activations (any float dtype; f32 accumulation inside --
       pass bf16 from the producer on v6e/v7x to halve HBM traffic).
    w: (1, 384)  -- PyTorch nn.Linear(384, 1) weight layout (out, in).
    b: (1,) or scalar bias.
    Returns: (B, 1) float32, matching the PyTorch module.
    """
    B, D = x.shape
    w = jnp.asarray(w, jnp.float32).reshape(1, D)
    b = jnp.asarray(b, jnp.float32).reshape(1, 1)

    # Batch tile: whole batch if small (block == full array dims, so the
    # (8,128) rule is trivially satisfied), else block_b (multiple of 8 & 128).
    tile_b = B if B <= block_b else block_b
    grid = (pl.cdiv(B, tile_b),)   # partial last block handled by Pallas

    x_bytes = x.size * x.dtype.itemsize
    cost = pl.CostEstimate(
        flops=2 * B * D,
        transcendentals=0,
        bytes_accessed=x_bytes + D * 4 + 4 + B * 4,
    )

    out = pl.pallas_call(
        mlp_kernel,
        out_shape=jax.ShapeDtypeStruct((1, B), jnp.float32),
        grid_spec=pltpu.PrefetchScalarGridSpec(
            num_scalar_prefetch=0,
            grid=grid,
            in_specs=[
                pl.BlockSpec((tile_b, D), lambda i: (i, 0)),        # x tile (pipelined)
                pl.BlockSpec((1, D), lambda i: (0, 0)),             # weight, resident
                pl.BlockSpec((1, 1), lambda i: (0, 0),
                             memory_space=pltpu.SMEM),              # bias scalar in SMEM
            ],
            out_specs=pl.BlockSpec((1, tile_b), lambda i: (0, i)),  # lane-dense output
        ),
        compiler_params=pltpu.CompilerParams(
            dimension_semantics=("parallel",),   # shard batch grid across TCs on v7x
        ),
        cost_estimate=cost,
    )(x, w, b)

    # (1, B) -> (B, 1): free row-major reshape (no padding to strip).
    return out[0, :B].reshape(B, 1)


if __name__ == "__main__":
    key = jax.random.PRNGKey(0)
    k_x, k_w, k_b = jax.random.split(key, 3)

    D = 384  # fixed by nn.Linear(384, 1)

    # Deterministic parameter init mirroring nn.Linear(384, 1):
    # uniform(-1/sqrt(in_features), 1/sqrt(in_features)); weight stored (out, in).
    bound = 1.0 / jnp.sqrt(jnp.float32(D))
    w = jax.random.uniform(k_w, (1, D), minval=-bound, maxval=bound,
                           dtype=jnp.float32)
    b = jax.random.uniform(k_b, (1,), minval=-bound, maxval=bound,
                           dtype=jnp.float32)

    # Small single-block case (block == full array dims).
    B = 8
    x = jax.random.normal(k_x, (B, D), dtype=jnp.float32)
    out = mlp_forward(x, w, b)
    jax.block_until_ready(out)
    ref = jnp.maximum(x @ w.T + b, 0.0)
    assert out.shape == (B, 1)
    assert jnp.allclose(out, ref, atol=1e-5), "mismatch vs reference (aligned)"

    # Multi-block case with a partial (masked) last block: B=200, tile=128.
    B2 = 200
    x2 = jax.random.normal(k_x, (B2, D), dtype=jnp.float32)
    out2 = mlp_forward(x2, w, b, block_b=128)
    jax.block_until_ready(out2)
    ref2 = jnp.maximum(x2 @ w.T + b, 0.0)
    assert out2.shape == (B2, 1)
    assert jnp.allclose(out2, ref2, atol=1e-5), "mismatch vs reference (partial block)"

    print("KERNEL_OK")
</pallas_src>

<mosaic_0001>
module attributes {stable_mosaic.version = 11 : i64} {
  func.func @mlp_kernel(%arg0: i32, %arg1: memref<8x384xf32, #tpu.memory_space<vmem>>, %arg2: memref<1x384xf32, #tpu.memory_space<vmem>>, %arg3: memref<1x1xf32, #tpu.memory_space<smem>>, %arg4: memref<1x8xf32, #tpu.memory_space<vmem>>) attributes {dimension_semantics = [#tpu.dimension_semantics<parallel>], iteration_bounds = array<i64: 1>, scalar_prefetch = 0 : i64, scratch_operands = 0 : i64, tpu.core_type = #tpu.core_type<tc>, window_params = [{transform_indices = @transform_0, window_bounds = array<i64: 8, 384>}, {pipeline_mode = #tpu.pipeline_mode<synchronous>, transform_indices = @transform_1, window_bounds = array<i64: 1, 384>}, {transform_indices = @transform_2, window_bounds = array<i64: 1, 1>}, {transform_indices = @transform_3, window_bounds = array<i64: 1, 8>}]} {
    %c0 = arith.constant 0 : index
    %c0_0 = arith.constant 0 : index
    %0 = vector.load %arg1[%c0, %c0_0] : memref<8x384xf32, #tpu.memory_space<vmem>>, vector<8x384xf32>
    %c0_1 = arith.constant 0 : index
    %c0_2 = arith.constant 0 : index
    %1 = vector.load %arg2[%c0_1, %c0_2] : memref<1x384xf32, #tpu.memory_space<vmem>>, vector<1x384xf32>
    %2 = vector.broadcast %1 : vector<1x384xf32> to vector<8x384xf32>
    %3 = arith.mulf %0, %2 : vector<8x384xf32>
    %cst = arith.constant dense<0.000000e+00> : vector<8xf32>
    %4 = vector.multi_reduction <add>, %3, %cst [1] : vector<8x384xf32> to vector<8xf32>
    %c0_3 = arith.constant 0 : index
    %c0_4 = arith.constant 0 : index
    %5 = memref.load %arg3[%c0_3, %c0_4] : memref<1x1xf32, #tpu.memory_space<smem>>
    %6 = vector.broadcast %5 : f32 to vector<8xf32>
    %7 = arith.addf %4, %6 : vector<8xf32>
    %cst_5 = arith.constant 0.000000e+00 : f32
    %8 = vector.broadcast %cst_5 : f32 to vector<8xf32>
    %9 = arith.maximumf %7, %8 : vector<8xf32>
    %10 = vector.shape_cast %9 : vector<8xf32> to vector<1x8xf32>
    %c0_6 = arith.constant 0 : index
    %c0_7 = arith.constant 0 : index
    %11 = vector.load %arg4[%c0_6, %c0_7] : memref<1x8xf32, #tpu.memory_space<vmem>>, vector<1x8xf32>
    tpu.vector_store %arg4[%c0_6, %c0_7], %10 {strides = array<i32>} : memref<1x8xf32, #tpu.memory_space<vmem>>, vector<1x8xf32>,
    return
  }
  func.func @transform_0(%arg0: i32) -> (i32, i32) {
    %c0_i32 = arith.constant 0 : i32
    %c0_i32_0 = arith.constant 0 : i32
    return %arg0, %c0_i32 : i32, i32
  }
  func.func @transform_1(%arg0: i32) -> (i32, i32) {
    %c0_i32 = arith.constant 0 : i32
    %c0_i32_0 = arith.constant 0 : i32
    %c0_i32_1 = arith.constant 0 : i32
    return %c0_i32, %c0_i32_0 : i32, i32
  }
  func.func @transform_2(%arg0: i32) -> (i32, i32) {
    %c0_i32 = arith.constant 0 : i32
    %c0_i32_0 = arith.constant 0 : i32
    %c0_i32_1 = arith.constant 0 : i32
    return %c0_i32, %c0_i32_0 : i32, i32
  }
  func.func @transform_3(%arg0: i32) -> (i32, i32) {
    %c0_i32 = arith.constant 0 : i32
    %c0_i32_0 = arith.constant 0 : i32
    return %c0_i32, %arg0 : i32, i32
  }
}

</mosaic_0001>

<llo_original>
// kernel: tpu_custom_call.1
$region0: #{tpu_custom_call.1}
  #allocation0 [shape = 'u32[]', space=smem, size = 0x4, offset = 0x4, fixed_abs, tag = 'smem constant byte address 0x4 - core index']
  #allocation1 [shape = 'u32[144,128]{1,0:T(1,128)}', space=vmem, size = 0x12000, scoped, tag = 'internal scratch']
  #allocation2 [shape = 'f32[1,1]{1,0:T(1,128)S(6)}', space=smem, size = 0x200, scoped, tag = 'scoped memory for tpu_custom_call.1']
  %s0 = inlined_call_operand.hbm [shape: f32[8,384], index: 0, kind: input, shape index: {}]
  %s1 = inlined_call_operand.vmem [shape: f32[1,384], index: 1, kind: input, shape index: {}]
  %s2 = inlined_call_operand.<no memory space> [shape: f32[1,1], index: 2, kind: input, shape index: {}]
  %s3 = inlined_call_operand.hbm [shape: f32[1,8], index: 3, kind: output, shape index: {}]
  %s4 = sld [smem:[#allocation0]]
  $region26: #{tpu_custom_call.1} parent=0
    _
  %s6 = ssub.s32 1, %s4
  %s7 = scalar_select 0, %s6, %s4
  %8 = sst [smem:[#allocation2]] %s2
  $region1: #{tpu_custom_call.1} parent=0
    #allocation3 [shape = 'u8[12288]{0}', space=vmem, size = 0x3000, scoped, tag = 'input window, operand 0, single buffered']
    #allocation4 [shape = 's32[1]{0}', space=sflag, size = 0x4, scoped, tag = 'scoped memory for tpu_custom_call.1']
    #allocation5 [shape = 's32[1]{0}', space=sflag, size = 0x4, scoped, tag = 'scoped memory for tpu_custom_call.1']
    #allocation6 [shape = 'u8[512]{0}', space=vmem, size = 0x400, scoped, tag = 'output window, operand 0, single buffered']
    %9 = vsyncpa [#allocation4], 0
    %10 = vsyncpa [#allocation5], 0
    // Predicated region
    $region2: #{tpu_custom_call.1} parent=1 // pred_check
      _
    $region3: #{tpu_custom_call.1} parent=1 // pred_check_branch
      %12 = sbr.rel (0) target = $region5
    $region4: #{tpu_custom_call.1} parent=1 // pred_region
      %s14 = ssub.s32 384, 384
      %15 = vsyncadd [#allocation4], %s14
      %s17 = sshll.u32 [#allocation3], 4
      %s18 = int_to_ptr.vmem [resolvable:$true] %s17
      %20 = dma.hbm_to_vmem [thread:$0]  %s0, 384, %s18, [#allocation4]
    $region5: #{tpu_custom_call.1} parent=1 // pred_fallthru
      _
    // Predicated region
    $region6: #{tpu_custom_call.1} parent=1 // pred_check
      _
    $region7: #{tpu_custom_call.1} parent=1 // pred_check_branch
      %22 = sbr.rel (0) target = $region9
    $region8: #{tpu_custom_call.1} parent=1 // pred_region
      _
    $region9: #{tpu_custom_call.1} parent=1 // pred_fallthru
      _
    // Predicated region
    $region10: #{tpu_custom_call.1} parent=1 // pred_check
      _
    $region11: #{tpu_custom_call.1} parent=1 // pred_check_branch
      %24 = sbr.rel (0) target = $region13
    $region12: #{tpu_custom_call.1} parent=1 // pred_region
      _
    $region13: #{tpu_custom_call.1} parent=1 // pred_fallthru
      _
    // Predicated region
    $region14: #{tpu_custom_call.1} parent=1 // pred_check
      _
    $region15: #{tpu_custom_call.1} parent=1 // pred_check_branch
      %26 = sbr.rel (0) target = $region17
    $region16: #{tpu_custom_call.1} parent=1 // pred_region
      %27 = dma.done [#allocation4], 384
    $region17: #{tpu_custom_call.1} parent=1 // pred_fallthru
      _
    %v28 = vld [vmem:[#allocation3] sm:$0xff]
    %v29 = vld [vmem:[#allocation3 + $0x8] sm:$0xff]
    %v30 = vld [vmem:[#allocation3 + $0x10] sm:$0xff]
    %v31 = vld [vmem:[%s1] sm:$0x7]
    %v33 = vlaneseq
    %v34 = vshrl.u32 %v33, 7
    %v35 = vsub.s32 0, %v34
    %v36 = vrot.slane %v31, %v35
    %v37 = vlaneseq
    %v38 = vshrl.u32 %v37, 7
    %v39 = vsub.s32 1, %v38
    %v40 = vrot.slane %v31, %v39
    %v41 = vlaneseq
    %v42 = vshrl.u32 %v41, 7
    %v43 = vsub.s32 2, %v42
    %v44 = vrot.slane %v31, %v43
    %v48 = vmul.f32 %v28, %v36
    %v49 = vmul.f32 %v29, %v40
    %v50 = vmul.f32 %v30, %v44
    %v51 = vadd.f32 %v48, %v49
    %v52 = vadd.f32 %v51, %v50
    %53 = vadd.xlane.f32.xlu0 %v52
    %v54 = vpop.xlane.xlu0 %53
    %s55 = sld [smem:[#allocation2]]
    %v56 = vstv %s55
    %v57 = vadd.f32 %v54, %v56
    %v58 = vmax.f32 %v57, 0.0
    %v60 = vlaneseq
    %v61 = vand.u32 %v60, 127
    %v62 = vlaneseq
    %v63 = vshrl.u32 %v62, 7
    %v64 = vsub.s32 %v61, %v63
    %v65 = vrot.slane %v58, %v64
    %vm67 = vcmask 57344
    %68 = vst.msk [vmem:[#allocation6] sm:$0x1] %vm67, %v65
    // Predicated region
    $region18: #{tpu_custom_call.1} parent=1 // pred_check
      _
    $region19: #{tpu_custom_call.1} parent=1 // pred_check_branch
      %70 = sbr.rel (0) target = $region21
    $region20: #{tpu_custom_call.1} parent=1 // pred_region
      %s72 = ssub.s32 16, 16
      %73 = vsyncadd [#allocation5], %s72
      %s75 = sshll.u32 [#allocation6], 4
      %s76 = int_to_ptr.vmem [resolvable:$true] %s75
      %78 = dma.vmem_to_hbm [thread:$0]  %s76, 16, %s3, [#allocation5]
    $region21: #{tpu_custom_call.1} parent=1 // pred_fallthru
      _
    // Predicated region
    $region22: #{tpu_custom_call.1} parent=1 // pred_check
      _
    $region23: #{tpu_custom_call.1} parent=1 // pred_check_branch
      %80 = sbr.rel (0) target = $region25
    $region24: #{tpu_custom_call.1} parent=1 // pred_region
      %81 = dma.done [#allocation5], 16
    $region25: #{tpu_custom_call.1} parent=1 // pred_fallthru
      _
    %82 = vsyncpa [#allocation4], 1
    %83 = vsyncpa [#allocation5], 1

</llo_original>
